<compile_context>
chip_gen: v7x
topology: tpu7x:2x2x1
jax: 0.10.0
libtpu: 0.0.40
codegen_flags: <defaults>
</compile_context>

<pallas_src>
import functools

import jax
import jax.numpy as jnp
from jax.experimental import pallas as pl
from jax.experimental.pallas import tpu as pltpu


_PAD = 128  # lane-aligned zero pad on both ends of each element's flat H*W axis


# ----------------------------------------------------------------------------
# Fused Pallas kernel (NB batch elements per grid step)
# ----------------------------------------------------------------------------
def _convgru_kernel(x_ref, h_ref, w1_ref, b1_ref, w2_ref, out_ref,
                    pad_ref, slab_ref, hslab_ref, *, H, W, Cx, Ch, NB):
    """Layouts (per grid step = NB batch elements):

      x_ref     (Cx, NB*H*W)
      h_ref     (Ch, NB*H*W)
      w1_ref    (3*Ch, 9*(Cx+Ch))    [read ; update ; output-conv x-part]
      b1_ref    (3*Ch, 1)            [br ; bu ; bo]
      w2_ref    (Ch, 9*Ch)           output-conv h-part (applied to read*h taps)
      out_ref   (Ch, NB*H*W)
    scratch (persists across steps; every read region is rewritten each step):
      pad_ref   (NB*(Cx+Ch), PAD+H*W+PAD)  zero-padded flat [x ; h] per element
      slab_ref  (9*(Cx+Ch), NB*H*W)        phase-1 im2col slab; tap-major with a
                                           full Cin strip per tap -> aligned,
                                           full-tile stores
      hslab_ref (9*Ch, NB*H*W)             phase-2 read*h im2col slab (own
                                           buffer -> no strided interleave)
    """
    HW = H * W
    Cin = Cx + Ch

    # --- column-validity masks, hoisted & built at full strip shape ---------
    # (the 9 shifted slab loads below are inherently lane-unaligned:
    #  start = PAD + dy*W + dx; acceptable because the XLU/compose slot has
    #  slack here.  Row validity comes for free from the zeroed pad bands.)
    xx_cin = jax.lax.broadcasted_iota(jnp.int32, (Cin, HW), 1) % W
    xx_ch = jax.lax.broadcasted_iota(jnp.int32, (Ch, HW), 1) % W
    masks_cin = {-1: xx_cin >= 1, 0: None, 1: xx_cin <= W - 2}
    masks_ch = {-1: xx_ch >= 1, 0: None, 1: xx_ch <= W - 2}

    # --- zero only the two PAD bands (2 aligned stores); interior is fully
    #     overwritten below, so no full-scratch re-zeroing per step. ----------
    pad_ref[:, 0:_PAD] = jnp.zeros((NB * Cin, _PAD), jnp.float32)
    pad_ref[:, _PAD + HW:_PAD + HW + _PAD] = jnp.zeros((NB * Cin, _PAD),
                                                       jnp.float32)

    x_val = x_ref[...]
    h_val = h_ref[...]

    for nb in range(NB):
        r0, c0 = nb * Cin, nb * HW
        pad_ref[r0:r0 + Cx, _PAD:_PAD + HW] = x_val[:, c0:c0 + HW]
        pad_ref[r0 + Cx:r0 + Cin, _PAD:_PAD + HW] = h_val[:, c0:c0 + HW]

    # --- phase-1 im2col slab: 9 shifted windows of the full [x;h] strip -----
    for nb in range(NB):
        r0, c0 = nb * Cin, nb * HW
        for t in range(9):
            dy, dx = t // 3 - 1, t % 3 - 1
            start = _PAD + dy * W + dx
            piece = pad_ref[r0:r0 + Cin, start:start + HW]
            m = masks_cin[dx]
            if m is not None:
                piece = jnp.where(m, piece, 0.0)
            slab_ref[t * Cin:(t + 1) * Cin, c0:c0 + HW] = piece

    # --- fused matmul: read gate, update gate, output-conv x contribution ---
    acc1 = jnp.dot(w1_ref[...], slab_ref[...],
                   preferred_element_type=jnp.float32) + b1_ref[...]
    gates = jax.nn.sigmoid(acc1[0:2 * Ch, :])      # kept in vregs (no scratch)
    read = gates[0:Ch, :]
    upd = gates[Ch:2 * Ch, :]
    cx = acc1[2 * Ch:3 * Ch, :]                    # wo_x @ x-taps + bo

    # --- refresh only the h rows of the pad with read*h, rebuild h-slab -----
    rh = read * h_val
    for nb in range(NB):
        r0, c0 = nb * Cin, nb * HW
        pad_ref[r0 + Cx:r0 + Cin, _PAD:_PAD + HW] = rh[:, c0:c0 + HW]
    for nb in range(NB):
        r0, c0 = nb * Cin, nb * HW
        for t in range(9):
            dy, dx = t // 3 - 1, t % 3 - 1
            start = _PAD + dy * W + dx
            piece = pad_ref[r0 + Cx:r0 + Cin, start:start + HW]
            m = masks_ch[dx]
            if m is not None:
                piece = jnp.where(m, piece, 0.0)
            hslab_ref[t * Ch:(t + 1) * Ch, c0:c0 + HW] = piece

    # --- output conv h-part (K = 9*Ch only), relu, GRU blend ----------------
    c = jnp.maximum(
        cx + jnp.dot(w2_ref[...], hslab_ref[...],
                     preferred_element_type=jnp.float32), 0.0)
    out_ref[...] = (upd * h_val + (1.0 - upd) * c).astype(out_ref.dtype)


# ----------------------------------------------------------------------------
# Wrapper (glue: layout reshapes + im2col weight packing)
# ----------------------------------------------------------------------------
def _w_to_mat(w_oihw):
    """(Co, Cin, 3, 3) OIHW -> (Co, 9*Cin), column index (ky*3+kx)*Cin + ci."""
    co, ci, kh, kw = w_oihw.shape
    return jnp.transpose(w_oihw, (0, 2, 3, 1)).reshape(co, kh * kw * ci)


def _pick_block_batch(N, HW):
    """NB elements per grid step: keep >= 2 grid steps when N >= 2 (v7x has 2
    TensorCores) and cap the lane width of the fused matmul."""
    if N < 4:
        return 1
    lane_cap = max(1, 4096 // HW)
    nb = 1
    for d in range(1, N // 2 + 1):
        if N % d == 0 and d <= lane_cap:
            nb = d
    return nb


def conv_gru_cell(x_nchw, prev_state_nchw, params):
    """ConvGRUCell forward.  Inputs/outputs are NCHW like the PyTorch module."""
    wr, br = params["wr"], params["br"]
    wu, bu = params["wu"], params["bu"]
    wo, bo = params["wo"], params["bo"]

    N, Cx, H, W = x_nchw.shape
    Ch = prev_state_nchw.shape[1]
    Cin = Cx + Ch
    HW = H * W

    # Flat-pad im2col is only valid while _PAD >= W+1 (dy=-1 tap starts at
    # column _PAD - W - 1); VMEM reads are not bounds-checked, so assert.
    assert _PAD >= W + 1, f"_PAD={_PAD} must be >= W+1={W + 1}"
    assert HW % 128 == 0, "H*W must be a multiple of 128 for lane-dense tiles"
    # TODO(synk): relax via an explicit H-tile grid axis for other spatials.

    NB = _pick_block_batch(N, HW)

    # (N, C, H, W) -> (C, N*H*W): channels on sublanes, batch*space on lanes.
    x2 = jnp.transpose(x_nchw.reshape(N, Cx, HW), (1, 0, 2)).reshape(Cx, N * HW)
    h2 = jnp.transpose(prev_state_nchw.reshape(N, Ch, HW),
                       (1, 0, 2)).reshape(Ch, N * HW)

    # Weight packing (column order (tap, channel) matches the slab layouts).
    wr_m, wu_m, wo_m = _w_to_mat(wr), _w_to_mat(wu), _w_to_mat(wo)
    x_cols = (jnp.arange(9 * Cin) % Cin < Cx).astype(wo_m.dtype)
    w1 = jnp.concatenate([wr_m, wu_m, wo_m * x_cols[None, :]], axis=0)
    b1 = jnp.concatenate([br, bu, bo]).reshape(3 * Ch, 1)
    w2 = jnp.transpose(wo[:, Cx:], (0, 2, 3, 1)).reshape(Ch, 9 * Ch)

    kernel = functools.partial(_convgru_kernel, H=H, W=W, Cx=Cx, Ch=Ch, NB=NB)

    out2 = pl.pallas_call(
        kernel,
        out_shape=jax.ShapeDtypeStruct((Ch, N * HW), jnp.float32),
        grid_spec=pltpu.PrefetchScalarGridSpec(
            num_scalar_prefetch=0,
            grid=(N // NB,),
            in_specs=[
                pl.BlockSpec((Cx, NB * HW), lambda n: (0, n)),
                pl.BlockSpec((Ch, NB * HW), lambda n: (0, n)),
                pl.BlockSpec((3 * Ch, 9 * Cin), lambda n: (0, 0)),
                pl.BlockSpec((3 * Ch, 1), lambda n: (0, 0)),
                pl.BlockSpec((Ch, 9 * Ch), lambda n: (0, 0)),
            ],
            out_specs=pl.BlockSpec((Ch, NB * HW), lambda n: (0, n)),
            scratch_shapes=[
                pltpu.VMEM((NB * Cin, _PAD + HW + _PAD), jnp.float32),  # pad
                pltpu.VMEM((9 * Cin, NB * HW), jnp.float32),            # slab
                pltpu.VMEM((9 * Ch, NB * HW), jnp.float32),             # h-slab
            ],
        ),
        compiler_params=pltpu.CompilerParams(
            dimension_semantics=("parallel",)),
    )(x2, h2, w1, b1, w2)

    out_nchw = jnp.transpose(out2.reshape(Ch, N, HW),
                             (1, 0, 2)).reshape(N, Ch, H, W)
    return out_nchw, out_nchw


# ----------------------------------------------------------------------------
# Parameter construction (deterministic, in-script)
# ----------------------------------------------------------------------------
def _spectral_normalize(w_oihw, eps=1e-4, n_iter=50):
    """W / sigma_max(W.reshape(Cout, -1)) via deterministic power iteration.

    # TODO(synk): PyTorch SpectralNorm keeps running u/v buffers updated once
    # per forward; here we use the converged sigma (fully-run power iteration).
    """
    cout = w_oihw.shape[0]
    w_mat = w_oihw.reshape(cout, -1)
    u = jnp.ones((cout,), jnp.float32)

    def body(_, u):
        v = w_mat.T @ u
        v = v / (jnp.linalg.norm(v) + eps)
        u = w_mat @ v
        u = u / (jnp.linalg.norm(u) + eps)
        return u

    u = jax.lax.fori_loop(0, n_iter, body, u)
    v = w_mat.T @ u
    v = v / (jnp.linalg.norm(v) + eps)
    sigma = u @ (w_mat @ v)
    return w_oihw / sigma


def make_params(key, in_channels, out_channels, k=3):
    """Deterministic ConvGRUCell params.  Conv weights init like torch Conv2d."""
    keys = jax.random.split(key, 6)
    fan_in = in_channels * k * k
    bound = 1.0 / jnp.sqrt(fan_in)

    def conv_w(kk):
        w = jax.random.uniform(kk, (out_channels, in_channels, k, k),
                               jnp.float32, -bound, bound)   # OIHW
        return _spectral_normalize(w)

    def conv_b(kk):
        return jax.random.uniform(kk, (out_channels,), jnp.float32,
                                  -bound, bound)

    return {
        "wr": conv_w(keys[0]), "br": conv_b(keys[1]),
        "wu": conv_w(keys[2]), "bu": conv_b(keys[3]),
        "wo": conv_w(keys[4]), "bo": conv_b(keys[5]),
    }


# ----------------------------------------------------------------------------
# Pure-JAX reference (for correctness check)
# ----------------------------------------------------------------------------
def reference_conv_gru(x_nchw, h_nchw, params):
    def conv(a, w, b):
        y = jax.lax.conv_general_dilated(
            a, w, window_strides=(1, 1), padding="SAME",
            dimension_numbers=("NCHW", "OIHW", "NCHW"))
        return y + b.reshape(1, -1, 1, 1)

    xh = jnp.concatenate([x_nchw, h_nchw], axis=1)
    read = jax.nn.sigmoid(conv(xh, params["wr"], params["br"]))
    upd = jax.nn.sigmoid(conv(xh, params["wu"], params["bu"]))
    gated = jnp.concatenate([x_nchw, read * h_nchw], axis=1)
    c = jax.nn.relu(conv(gated, params["wo"], params["bo"]))
    return upd * h_nchw + (1.0 - upd) * c


# ----------------------------------------------------------------------------
if __name__ == "__main__":
    key = jax.random.PRNGKey(0)
    N, Cx, Ch, H, W = 2, 4, 4, 16, 16          # prev_state has Ch channels
    in_channels = Cx + Ch                      # convs see concat([x, h])
    out_channels = Ch

    k_params, k_x, k_h = jax.random.split(key, 3)
    params = make_params(k_params, in_channels, out_channels)

    x = jax.random.normal(k_x, (N, Cx, H, W), jnp.float32)
    prev_state = jax.random.normal(k_h, (N, Ch, H, W), jnp.float32)

    out, new_state = jax.jit(conv_gru_cell)(x, prev_state, params)
    jax.block_until_ready(out)

    ref = reference_conv_gru(x, prev_state, params)
    assert out.shape == (N, Ch, H, W)
    assert new_state.shape == (N, Ch, H, W)
    assert jnp.allclose(out, ref, atol=1e-4, rtol=1e-4), "mismatch vs reference"

    print("KERNEL_OK")
</pallas_src>

<mosaic_0001>
module attributes {stable_mosaic.version = 11 : i64} {
  func.func @_convgru_kernel(%arg0: i32, %arg1: memref<4x256xf32, #tpu.memory_space<vmem>>, %arg2: memref<4x256xf32, #tpu.memory_space<vmem>>, %arg3: memref<12x72xf32, #tpu.memory_space<vmem>>, %arg4: memref<12x1xf32, #tpu.memory_space<vmem>>, %arg5: memref<4x36xf32, #tpu.memory_space<vmem>>, %arg6: memref<4x256xf32, #tpu.memory_space<vmem>>, %arg7: memref<8x512xf32, #tpu.memory_space<vmem>>, %arg8: memref<72x256xf32, #tpu.memory_space<vmem>>, %arg9: memref<36x256xf32, #tpu.memory_space<vmem>>) attributes {dimension_semantics = [#tpu.dimension_semantics<parallel>], iteration_bounds = array<i64: 2>, scalar_prefetch = 0 : i64, scratch_operands = 3 : i64, tpu.core_type = #tpu.core_type<tc>, window_params = [{transform_indices = @transform_0, window_bounds = array<i64: 4, 256>}, {transform_indices = @transform_1, window_bounds = array<i64: 4, 256>}, {pipeline_mode = #tpu.pipeline_mode<synchronous>, transform_indices = @transform_2, window_bounds = array<i64: 12, 72>}, {pipeline_mode = #tpu.pipeline_mode<synchronous>, transform_indices = @transform_3, window_bounds = array<i64: 12, 1>}, {pipeline_mode = #tpu.pipeline_mode<synchronous>, transform_indices = @transform_4, window_bounds = array<i64: 4, 36>}, {transform_indices = @transform_5, window_bounds = array<i64: 4, 256>}]} {
    %0 = tpu.iota {dimensions = array<i32: 1>} : vector<8x256xi32>
    %c16_i32 = arith.constant 16 : i32
    %c0_i32 = arith.constant 0 : i32
    %1 = arith.cmpi eq, %c16_i32, %c0_i32 : i32
    %c1_i32 = arith.constant 1 : i32
    %2 = arith.select %1, %c1_i32, %c16_i32 : i32
    %3 = vector.broadcast %2 : i32 to vector<8x256xi32>
    %4 = arith.remsi %0, %3 : vector<8x256xi32>
    %c0_i32_0 = arith.constant 0 : i32
    %5 = vector.broadcast %c0_i32_0 : i32 to vector<8x256xi32>
    %6 = arith.cmpi ne, %4, %5 : vector<8x256xi32>
    %c0_i32_1 = arith.constant 0 : i32
    %7 = vector.broadcast %c0_i32_1 : i32 to vector<8x256xi32>
    %8 = arith.cmpi slt, %4, %7 : vector<8x256xi32>
    %c0_i32_2 = arith.constant 0 : i32
    %9 = arith.cmpi slt, %2, %c0_i32_2 : i32
    %10 = vector.broadcast %9 : i1 to vector<8x256xi1>
    %11 = vector.broadcast %10 : vector<8x256xi1> to vector<8x256xi1>
    %12 = arith.xori %8, %11 : vector<8x256xi1>
    %13 = arith.andi %12, %6 : vector<8x256xi1>
    %14 = vector.broadcast %2 : i32 to vector<8x256xi32>
    %15 = arith.addi %4, %14 : vector<8x256xi32>
    %16 = arith.select %13, %15, %4 : vector<8x256xi1>, vector<8x256xi32>
    %17 = tpu.iota {dimensions = array<i32: 1>} : vector<4x256xi32>
    %c16_i32_3 = arith.constant 16 : i32
    %c0_i32_4 = arith.constant 0 : i32
    %18 = arith.cmpi eq, %c16_i32_3, %c0_i32_4 : i32
    %c1_i32_5 = arith.constant 1 : i32
    %19 = arith.select %18, %c1_i32_5, %c16_i32_3 : i32
    %20 = vector.broadcast %19 : i32 to vector<4x256xi32>
    %21 = arith.remsi %17, %20 : vector<4x256xi32>
    %c0_i32_6 = arith.constant 0 : i32
    %22 = vector.broadcast %c0_i32_6 : i32 to vector<4x256xi32>
    %23 = arith.cmpi ne, %21, %22 : vector<4x256xi32>
    %c0_i32_7 = arith.constant 0 : i32
    %24 = vector.broadcast %c0_i32_7 : i32 to vector<4x256xi32>
    %25 = arith.cmpi slt, %21, %24 : vector<4x256xi32>
    %c0_i32_8 = arith.constant 0 : i32
    %26 = arith.cmpi slt, %19, %c0_i32_8 : i32
    %27 = vector.broadcast %26 : i1 to vector<4x256xi1>
    %28 = vector.broadcast %27 : vector<4x256xi1> to vector<4x256xi1>
    %29 = arith.xori %25, %28 : vector<4x256xi1>
    %30 = arith.andi %29, %23 : vector<4x256xi1>
    %31 = vector.broadcast %19 : i32 to vector<4x256xi32>
    %32 = arith.addi %21, %31 : vector<4x256xi32>
    %33 = arith.select %30, %32, %21 : vector<4x256xi1>, vector<4x256xi32>
    %c1_i32_9 = arith.constant 1 : i32
    %34 = vector.broadcast %c1_i32_9 : i32 to vector<8x256xi32>
    %35 = arith.cmpi sge, %16, %34 : vector<8x256xi32>
    %c14_i32 = arith.constant 14 : i32
    %36 = vector.broadcast %c14_i32 : i32 to vector<8x256xi32>
    %37 = arith.cmpi sle, %16, %36 : vector<8x256xi32>
    %c1_i32_10 = arith.constant 1 : i32
    %38 = vector.broadcast %c1_i32_10 : i32 to vector<4x256xi32>
    %39 = arith.cmpi sge, %33, %38 : vector<4x256xi32>
    %c14_i32_11 = arith.constant 14 : i32
    %40 = vector.broadcast %c14_i32_11 : i32 to vector<4x256xi32>
    %41 = arith.cmpi sle, %33, %40 : vector<4x256xi32>
    %cst = arith.constant 0.000000e+00 : f32
    %42 = vector.broadcast %cst : f32 to vector<8x128xf32>
    %c0 = arith.constant 0 : index
    %c0_12 = arith.constant 0 : index
    %43 = vector.load %arg7[%c0, %c0_12] : memref<8x512xf32, #tpu.memory_space<vmem>>, vector<8x128xf32>
    tpu.vector_store %arg7[%c0, %c0_12], %42 {strides = array<i32>} : memref<8x512xf32, #tpu.memory_space<vmem>>, vector<8x128xf32>,
    %cst_13 = arith.constant 0.000000e+00 : f32
    %44 = vector.broadcast %cst_13 : f32 to vector<8x128xf32>
    %c0_14 = arith.constant 0 : index
    %c384 = arith.constant 384 : index
    %45 = vector.load %arg7[%c0_14, %c384] : memref<8x512xf32, #tpu.memory_space<vmem>>, vector<8x128xf32>
    tpu.vector_store %arg7[%c0_14, %c384], %44 {strides = array<i32>} : memref<8x512xf32, #tpu.memory_space<vmem>>, vector<8x128xf32>,
    %c0_15 = arith.constant 0 : index
    %c0_16 = arith.constant 0 : index
    %46 = vector.load %arg1[%c0_15, %c0_16] : memref<4x256xf32, #tpu.memory_space<vmem>>, vector<4x256xf32>
    %c0_17 = arith.constant 0 : index
    %c0_18 = arith.constant 0 : index
    %47 = vector.load %arg2[%c0_17, %c0_18] : memref<4x256xf32, #tpu.memory_space<vmem>>, vector<4x256xf32>
    %c0_19 = arith.constant 0 : index
    %c128 = arith.constant 128 : index
    %48 = vector.load %arg7[%c0_19, %c128] : memref<8x512xf32, #tpu.memory_space<vmem>>, vector<4x256xf32>
    tpu.vector_store %arg7[%c0_19, %c128], %46 {strides = array<i32>} : memref<8x512xf32, #tpu.memory_space<vmem>>, vector<4x256xf32>,
    %c4 = arith.constant 4 : index
    %c128_20 = arith.constant 128 : index
    %49 = vector.load %arg7[%c4, %c128_20] : memref<8x512xf32, #tpu.memory_space<vmem>>, vector<4x256xf32>
    tpu.vector_store %arg7[%c4, %c128_20], %47 {strides = array<i32>} : memref<8x512xf32, #tpu.memory_space<vmem>>, vector<4x256xf32>,
    %c0_21 = arith.constant 0 : index
    %c111 = arith.constant 111 : index
    %50 = vector.load %arg7[%c0_21, %c111] : memref<8x512xf32, #tpu.memory_space<vmem>>, vector<8x256xf32>
    %cst_22 = arith.constant 0.000000e+00 : f32
    %51 = vector.broadcast %cst_22 : f32 to vector<8x256xf32>
    %52 = arith.select %35, %50, %51 : vector<8x256xi1>, vector<8x256xf32>
    %c0_23 = arith.constant 0 : index
    %c0_24 = arith.constant 0 : index
    %53 = vector.load %arg8[%c0_23, %c0_24] : memref<72x256xf32, #tpu.memory_space<vmem>>, vector<8x256xf32>
    tpu.vector_store %arg8[%c0_23, %c0_24], %52 {strides = array<i32>} : memref<72x256xf32, #tpu.memory_space<vmem>>, vector<8x256xf32>,
    %c0_25 = arith.constant 0 : index
    %c112 = arith.constant 112 : index
    %54 = vector.load %arg7[%c0_25, %c112] : memref<8x512xf32, #tpu.memory_space<vmem>>, vector<8x256xf32>
    %c8 = arith.constant 8 : index
    %c0_26 = arith.constant 0 : index
    %55 = vector.load %arg8[%c8, %c0_26] : memref<72x256xf32, #tpu.memory_space<vmem>>, vector<8x256xf32>
    tpu.vector_store %arg8[%c8, %c0_26], %54 {strides = array<i32>} : memref<72x256xf32, #tpu.memory_space<vmem>>, vector<8x256xf32>,
    %c0_27 = arith.constant 0 : index
    %c113 = arith.constant 113 : index
    %56 = vector.load %arg7[%c0_27, %c113] : memref<8x512xf32, #tpu.memory_space<vmem>>, vector<8x256xf32>
    %cst_28 = arith.constant 0.000000e+00 : f32
    %57 = vector.broadcast %cst_28 : f32 to vector<8x256xf32>
    %58 = arith.select %37, %56, %57 : vector<8x256xi1>, vector<8x256xf32>
    %c16 = arith.constant 16 : index
    %c0_29 = arith.constant 0 : index
    %59 = vector.load %arg8[%c16, %c0_29] : memref<72x256xf32, #tpu.memory_space<vmem>>, vector<8x256xf32>
    tpu.vector_store %arg8[%c16, %c0_29], %58 {strides = array<i32>} : memref<72x256xf32, #tpu.memory_space<vmem>>, vector<8x256xf32>,
    %c0_30 = arith.constant 0 : index
    %c127 = arith.constant 127 : index
    %60 = vector.load %arg7[%c0_30, %c127] : memref<8x512xf32, #tpu.memory_space<vmem>>, vector<8x256xf32>
    %cst_31 = arith.constant 0.000000e+00 : f32
    %61 = vector.broadcast %cst_31 : f32 to vector<8x256xf32>
    %62 = arith.select %35, %60, %61 : vector<8x256xi1>, vector<8x256xf32>
    %c24 = arith.constant 24 : index
    %c0_32 = arith.constant 0 : index
    %63 = vector.load %arg8[%c24, %c0_32] : memref<72x256xf32, #tpu.memory_space<vmem>>, vector<8x256xf32>
    tpu.vector_store %arg8[%c24, %c0_32], %62 {strides = array<i32>} : memref<72x256xf32, #tpu.memory_space<vmem>>, vector<8x256xf32>,
    %c0_33 = arith.constant 0 : index
    %c128_34 = arith.constant 128 : index
    %64 = vector.load %arg7[%c0_33, %c128_34] : memref<8x512xf32, #tpu.memory_space<vmem>>, vector<8x256xf32>
    %c32 = arith.constant 32 : index
    %c0_35 = arith.constant 0 : index
    %65 = vector.load %arg8[%c32, %c0_35] : memref<72x256xf32, #tpu.memory_space<vmem>>, vector<8x256xf32>
    tpu.vector_store %arg8[%c32, %c0_35], %64 {strides = array<i32>} : memref<72x256xf32, #tpu.memory_space<vmem>>, vector<8x256xf32>,
    %c0_36 = arith.constant 0 : index
    %c129 = arith.constant 129 : index
    %66 = vector.load %arg7[%c0_36, %c129] : memref<8x512xf32, #tpu.memory_space<vmem>>, vector<8x256xf32>
    %cst_37 = arith.constant 0.000000e+00 : f32
    %67 = vector.broadcast %cst_37 : f32 to vector<8x256xf32>
    %68 = arith.select %37, %66, %67 : vector<8x256xi1>, vector<8x256xf32>
    %c40 = arith.constant 40 : index
    %c0_38 = arith.constant 0 : index
    %69 = vector.load %arg8[%c40, %c0_38] : memref<72x256xf32, #tpu.memory_space<vmem>>, vector<8x256xf32>
    tpu.vector_store %arg8[%c40, %c0_38], %68 {strides = array<i32>} : memref<72x256xf32, #tpu.memory_space<vmem>>, vector<8x256xf32>,
    %c0_39 = arith.constant 0 : index
    %c143 = arith.constant 143 : index
    %70 = vector.load %arg7[%c0_39, %c143] : memref<8x512xf32, #tpu.memory_space<vmem>>, vector<8x256xf32>
    %cst_40 = arith.constant 0.000000e+00 : f32
    %71 = vector.broadcast %cst_40 : f32 to vector<8x256xf32>
    %72 = arith.select %35, %70, %71 : vector<8x256xi1>, vector<8x256xf32>
    %c48 = arith.constant 48 : index
    %c0_41 = arith.constant 0 : index
    %73 = vector.load %arg8[%c48, %c0_41] : memref<72x256xf32, #tpu.memory_space<vmem>>, vector<8x256xf32>
    tpu.vector_store %arg8[%c48, %c0_41], %72 {strides = array<i32>} : memref<72x256xf32, #tpu.memory_space<vmem>>, vector<8x256xf32>,
    %c0_42 = arith.constant 0 : index
    %c144 = arith.constant 144 : index
    %74 = vector.load %arg7[%c0_42, %c144] : memref<8x512xf32, #tpu.memory_space<vmem>>, vector<8x256xf32>
    %c56 = arith.constant 56 : index
    %c0_43 = arith.constant 0 : index
    %75 = vector.load %arg8[%c56, %c0_43] : memref<72x256xf32, #tpu.memory_space<vmem>>, vector<8x256xf32>
    tpu.vector_store %arg8[%c56, %c0_43], %74 {strides = array<i32>} : memref<72x256xf32, #tpu.memory_space<vmem>>, vector<8x256xf32>,
    %c0_44 = arith.constant 0 : index
    %c145 = arith.constant 145 : index
    %76 = vector.load %arg7[%c0_44, %c145] : memref<8x512xf32, #tpu.memory_space<vmem>>, vector<8x256xf32>
    %cst_45 = arith.constant 0.000000e+00 : f32
    %77 = vector.broadcast %cst_45 : f32 to vector<8x256xf32>
    %78 = arith.select %37, %76, %77 : vector<8x256xi1>, vector<8x256xf32>
    %c64 = arith.constant 64 : index
    %c0_46 = arith.constant 0 : index
    %79 = vector.load %arg8[%c64, %c0_46] : memref<72x256xf32, #tpu.memory_space<vmem>>, vector<8x256xf32>
    tpu.vector_store %arg8[%c64, %c0_46], %78 {strides = array<i32>} : memref<72x256xf32, #tpu.memory_space<vmem>>, vector<8x256xf32>,
    %c0_47 = arith.constant 0 : index
    %c0_48 = arith.constant 0 : index
    %80 = vector.load %arg3[%c0_47, %c0_48] : memref<12x72xf32, #tpu.memory_space<vmem>>, vector<12x72xf32>
    %c0_49 = arith.constant 0 : index
    %c0_50 = arith.constant 0 : index
    %81 = vector.load %arg8[%c0_49, %c0_50] : memref<72x256xf32, #tpu.memory_space<vmem>>, vector<72x256xf32>
    %cst_51 = arith.constant dense<0.000000e+00> : vector<12x256xf32>
    %82 = tpu.matmul %80, %81, %cst_51 {dimension_numbers = #tpu.dot_dimension_numbers<[1], [0], [0], [1], [0, 0, 1, 1], [], []>} : vector<12x72xf32>, vector<72x256xf32>, vector<12x256xf32> -> vector<12x256xf32>
    %c0_52 = arith.constant 0 : index
    %c0_53 = arith.constant 0 : index
    %83 = vector.load %arg4[%c0_52, %c0_53] : memref<12x1xf32, #tpu.memory_space<vmem>>, vector<12x1xf32>
    %84 = vector.broadcast %83 : vector<12x1xf32> to vector<12x256xf32>
    %85 = arith.addf %82, %84 : vector<12x256xf32>
    %86 = vector.extract_strided_slice %85 {offsets = [0, 0], sizes = [8, 256], strides = [1, 1]} : vector<12x256xf32> to vector<8x256xf32>
    %87 = arith.negf %86 : vector<8x256xf32>
    %88 = math.exp %87 : vector<8x256xf32>
    %cst_54 = arith.constant 1.000000e+00 : f32
    %89 = vector.broadcast %cst_54 : f32 to vector<8x256xf32>
    %90 = arith.addf %89, %88 : vector<8x256xf32>
    %91 = arith.divf %89, %90 : vector<8x256xf32>
    %92 = vector.extract_strided_slice %91 {offsets = [0, 0], sizes = [4, 256], strides = [1, 1]} : vector<8x256xf32> to vector<4x256xf32>
    %93 = vector.extract_strided_slice %91 {offsets = [4, 0], sizes = [4, 256], strides = [1, 1]} : vector<8x256xf32> to vector<4x256xf32>
    %94 = vector.extract_strided_slice %85 {offsets = [8, 0], sizes = [4, 256], strides = [1, 1]} : vector<12x256xf32> to vector<4x256xf32>
    %95 = arith.mulf %92, %47 : vector<4x256xf32>
    %c4_55 = arith.constant 4 : index
    %c128_56 = arith.constant 128 : index
    %96 = vector.load %arg7[%c4_55, %c128_56] : memref<8x512xf32, #tpu.memory_space<vmem>>, vector<4x256xf32>
    tpu.vector_store %arg7[%c4_55, %c128_56], %95 {strides = array<i32>} : memref<8x512xf32, #tpu.memory_space<vmem>>, vector<4x256xf32>,
    %c4_57 = arith.constant 4 : index
    %c111_58 = arith.constant 111 : index
    %97 = vector.load %arg7[%c4_57, %c111_58] : memref<8x512xf32, #tpu.memory_space<vmem>>, vector<4x256xf32>
    %cst_59 = arith.constant 0.000000e+00 : f32
    %98 = vector.broadcast %cst_59 : f32 to vector<4x256xf32>
    %99 = arith.select %39, %97, %98 : vector<4x256xi1>, vector<4x256xf32>
    %c0_60 = arith.constant 0 : index
    %c0_61 = arith.constant 0 : index
    %100 = vector.load %arg9[%c0_60, %c0_61] : memref<36x256xf32, #tpu.memory_space<vmem>>, vector<4x256xf32>
    tpu.vector_store %arg9[%c0_60, %c0_61], %99 {strides = array<i32>} : memref<36x256xf32, #tpu.memory_space<vmem>>, vector<4x256xf32>,
    %c4_62 = arith.constant 4 : index
    %c112_63 = arith.constant 112 : index
    %101 = vector.load %arg7[%c4_62, %c112_63] : memref<8x512xf32, #tpu.memory_space<vmem>>, vector<4x256xf32>
    %c4_64 = arith.constant 4 : index
    %c0_65 = arith.constant 0 : index
    %102 = vector.load %arg9[%c4_64, %c0_65] : memref<36x256xf32, #tpu.memory_space<vmem>>, vector<4x256xf32>
    tpu.vector_store %arg9[%c4_64, %c0_65], %101 {strides = array<i32>} : memref<36x256xf32, #tpu.memory_space<vmem>>, vector<4x256xf32>,
    %c4_66 = arith.constant 4 : index
    %c113_67 = arith.constant 113 : index
    %103 = vector.load %arg7[%c4_66, %c113_67] : memref<8x512xf32, #tpu.memory_space<vmem>>, vector<4x256xf32>
    %cst_68 = arith.constant 0.000000e+00 : f32
    %104 = vector.broadcast %cst_68 : f32 to vector<4x256xf32>
    %105 = arith.select %41, %103, %104 : vector<4x256xi1>, vector<4x256xf32>
    %c8_69 = arith.constant 8 : index
    %c0_70 = arith.constant 0 : index
    %106 = vector.load %arg9[%c8_69, %c0_70] : memref<36x256xf32, #tpu.memory_space<vmem>>, vector<4x256xf32>
    tpu.vector_store %arg9[%c8_69, %c0_70], %105 {strides = array<i32>} : memref<36x256xf32, #tpu.memory_space<vmem>>, vector<4x256xf32>,
    %c4_71 = arith.constant 4 : index
    %c127_72 = arith.constant 127 : index
    %107 = vector.load %arg7[%c4_71, %c127_72] : memref<8x512xf32, #tpu.memory_space<vmem>>, vector<4x256xf32>
    %cst_73 = arith.constant 0.000000e+00 : f32
    %108 = vector.broadcast %cst_73 : f32 to vector<4x256xf32>
    %109 = arith.select %39, %107, %108 : vector<4x256xi1>, vector<4x256xf32>
    %c12 = arith.constant 12 : index
    %c0_74 = arith.constant 0 : index
    %110 = vector.load %arg9[%c12, %c0_74] : memref<36x256xf32, #tpu.memory_space<vmem>>, vector<4x256xf32>
    tpu.vector_store %arg9[%c12, %c0_74], %109 {strides = array<i32>} : memref<36x256xf32, #tpu.memory_space<vmem>>, vector<4x256xf32>,
    %c4_75 = arith.constant 4 : index
    %c128_76 = arith.constant 128 : index
    %111 = vector.load %arg7[%c4_75, %c128_76] : memref<8x512xf32, #tpu.memory_space<vmem>>, vector<4x256xf32>
    %c16_77 = arith.constant 16 : index
    %c0_78 = arith.constant 0 : index
    %112 = vector.load %arg9[%c16_77, %c0_78] : memref<36x256xf32, #tpu.memory_space<vmem>>, vector<4x256xf32>
    tpu.vector_store %arg9[%c16_77, %c0_78], %111 {strides = array<i32>} : memref<36x256xf32, #tpu.memory_space<vmem>>, vector<4x256xf32>,
    %c4_79 = arith.constant 4 : index
    %c129_80 = arith.constant 129 : index
    %113 = vector.load %arg7[%c4_79, %c129_80] : memref<8x512xf32, #tpu.memory_space<vmem>>, vector<4x256xf32>
    %cst_81 = arith.constant 0.000000e+00 : f32
    %114 = vector.broadcast %cst_81 : f32 to vector<4x256xf32>
    %115 = arith.select %41, %113, %114 : vector<4x256xi1>, vector<4x256xf32>
    %c20 = arith.constant 20 : index
    %c0_82 = arith.constant 0 : index
    %116 = vector.load %arg9[%c20, %c0_82] : memref<36x256xf32, #tpu.memory_space<vmem>>, vector<4x256xf32>
    tpu.vector_store %arg9[%c20, %c0_82], %115 {strides = array<i32>} : memref<36x256xf32, #tpu.memory_space<vmem>>, vector<4x256xf32>,
    %c4_83 = arith.constant 4 : index
    %c143_84 = arith.constant 143 : index
    %117 = vector.load %arg7[%c4_83, %c143_84] : memref<8x512xf32, #tpu.memory_space<vmem>>, vector<4x256xf32>
    %cst_85 = arith.constant 0.000000e+00 : f32
    %118 = vector.broadcast %cst_85 : f32 to vector<4x256xf32>
    %119 = arith.select %39, %117, %118 : vector<4x256xi1>, vector<4x256xf32>
    %c24_86 = arith.constant 24 : index
    %c0_87 = arith.constant 0 : index
    %120 = vector.load %arg9[%c24_86, %c0_87] : memref<36x256xf32, #tpu.memory_space<vmem>>, vector<4x256xf32>
    tpu.vector_store %arg9[%c24_86, %c0_87], %119 {strides = array<i32>} : memref<36x256xf32, #tpu.memory_space<vmem>>, vector<4x256xf32>,
    %c4_88 = arith.constant 4 : index
    %c144_89 = arith.constant 144 : index
    %121 = vector.load %arg7[%c4_88, %c144_89] : memref<8x512xf32, #tpu.memory_space<vmem>>, vector<4x256xf32>
    %c28 = arith.constant 28 : index
    %c0_90 = arith.constant 0 : index
    %122 = vector.load %arg9[%c28, %c0_90] : memref<36x256xf32, #tpu.memory_space<vmem>>, vector<4x256xf32>
    tpu.vector_store %arg9[%c28, %c0_90], %121 {strides = array<i32>} : memref<36x256xf32, #tpu.memory_space<vmem>>, vector<4x256xf32>,
    %c4_91 = arith.constant 4 : index
    %c145_92 = arith.constant 145 : index
    %123 = vector.load %arg7[%c4_91, %c145_92] : memref<8x512xf32, #tpu.memory_space<vmem>>, vector<4x256xf32>
    %cst_93 = arith.constant 0.000000e+00 : f32
    %124 = vector.broadcast %cst_93 : f32 to vector<4x256xf32>
    %125 = arith.select %41, %123, %124 : vector<4x256xi1>, vector<4x256xf32>
    %c32_94 = arith.constant 32 : index
    %c0_95 = arith.constant 0 : index
    %126 = vector.load %arg9[%c32_94, %c0_95] : memref<36x256xf32, #tpu.memory_space<vmem>>, vector<4x256xf32>
    tpu.vector_store %arg9[%c32_94, %c0_95], %125 {strides = array<i32>} : memref<36x256xf32, #tpu.memory_space<vmem>>, vector<4x256xf32>,
    %c0_96 = arith.constant 0 : index
    %c0_97 = arith.constant 0 : index
    %127 = vector.load %arg5[%c0_96, %c0_97] : memref<4x36xf32, #tpu.memory_space<vmem>>, vector<4x36xf32>
    %c0_98 = arith.constant 0 : index
    %c0_99 = arith.constant 0 : index
    %128 = vector.load %arg9[%c0_98, %c0_99] : memref<36x256xf32, #tpu.memory_space<vmem>>, vector<36x256xf32>
    %cst_100 = arith.constant dense<0.000000e+00> : vector<4x256xf32>
    %129 = tpu.matmul %127, %128, %cst_100 {dimension_numbers = #tpu.dot_dimension_numbers<[1], [0], [0], [1], [0, 0, 1, 1], [], []>} : vector<4x36xf32>, vector<36x256xf32>, vector<4x256xf32> -> vector<4x256xf32>
    %130 = arith.addf %94, %129 : vector<4x256xf32>
    %cst_101 = arith.constant 0.000000e+00 : f32
    %131 = vector.broadcast %cst_101 : f32 to vector<4x256xf32>
    %132 = arith.maximumf %130, %131 : vector<4x256xf32>
    %133 = arith.mulf %93, %47 : vector<4x256xf32>
    %cst_102 = arith.constant 1.000000e+00 : f32
    %134 = vector.broadcast %cst_102 : f32 to vector<4x256xf32>
    %135 = arith.subf %134, %93 : vector<4x256xf32>
    %136 = arith.mulf %135, %132 : vector<4x256xf32>
    %137 = arith.addf %133, %136 : vector<4x256xf32>
    %c0_103 = arith.constant 0 : index
    %c0_104 = arith.constant 0 : index
    %138 = vector.load %arg6[%c0_103, %c0_104] : memref<4x256xf32, #tpu.memory_space<vmem>>, vector<4x256xf32>
    tpu.vector_store %arg6[%c0_103, %c0_104], %137 {strides = array<i32>} : memref<4x256xf32, #tpu.memory_space<vmem>>, vector<4x256xf32>,
    return
  }
  func.func @transform_0(%arg0: i32) -> (i32, i32) {
    %c0_i32 = arith.constant 0 : i32
    %c0_i32_0 = arith.constant 0 : i32
    return %c0_i32, %arg0 : i32, i32
  }
  func.func @transform_1(%arg0: i32) -> (i32, i32) {
    %c0_i32 = arith.constant 0 : i32
    %c0_i32_0 = arith.constant 0 : i32
    return %c0_i32, %arg0 : i32, i32
  }
  func.func @transform_2(%arg0: i32) -> (i32, i32) {
    %c0_i32 = arith.constant 0 : i32
    %c0_i32_0 = arith.constant 0 : i32
    %c0_i32_1 = arith.constant 0 : i32
    return %c0_i32, %c0_i32_0 : i32, i32
  }
  func.func @transform_3(%arg0: i32) -> (i32, i32) {
    %c0_i32 = arith.constant 0 : i32
    %c0_i32_0 = arith.constant 0 : i32
    %c0_i32_1 = arith.constant 0 : i32
    return %c0_i32, %c0_i32_0 : i32, i32
  }
  func.func @transform_4(%arg0: i32) -> (i32, i32) {
    %c0_i32 = arith.constant 0 : i32
    %c0_i32_0 = arith.constant 0 : i32
    %c0_i32_1 = arith.constant 0 : i32
    return %c0_i32, %c0_i32_0 : i32, i32
  }
  func.func @transform_5(%arg0: i32) -> (i32, i32) {
    %c0_i32 = arith.constant 0 : i32
    %c0_i32_0 = arith.constant 0 : i32
    return %c0_i32, %arg0 : i32, i32
  }
}

</mosaic_0001>

<llo_original>
// kernel: conv_gru_cell.1
$region0: #{conv_gru_cell.1}
  #allocation0 [shape = 'u32[]', space=smem, size = 0x4, offset = 0x4, fixed_abs, tag = 'smem constant byte address 0x4 - core index']
  #allocation1 [shape = 'u32[144,128]{1,0:T(1,128)}', space=vmem, size = 0x12000, scoped, tag = 'internal scratch']
  #allocation2 [shape = 'f32[8,512]{1,0:T(8,128)}', space=vmem, size = 0x4000, scoped, tag = 'scratch operand']
  #allocation3 [shape = 'f32[72,256]{1,0:T(8,128)}', space=vmem, size = 0x12000, scoped, tag = 'scratch operand']
  #allocation4 [shape = 'f32[36,256]{1,0:T(8,128)}', space=vmem, size = 0xa000, scoped, tag = 'scratch operand']
  %s0 = inlined_call_operand.vmem [shape: f32[4,512], index: 0, kind: input, shape index: {}]
  %s1 = inlined_call_operand.vmem [shape: f32[4,512], index: 1, kind: input, shape index: {}]
  %s2 = inlined_call_operand.vmem [shape: f32[12,72], index: 2, kind: input, shape index: {}]
  %s3 = inlined_call_operand.vmem [shape: f32[12,1], index: 3, kind: input, shape index: {}]
  %s4 = inlined_call_operand.vmem [shape: f32[4,36], index: 4, kind: input, shape index: {}]
  %s5 = inlined_call_operand.vmem [shape: f32[4,512], index: 5, kind: output, shape index: {}]
  %s6 = sld [smem:[#allocation0]]
  $region53: #{conv_gru_cell.1} parent=0
    _
  %s8 = ssub.s32 1, %s6
  %s9 = scalar_select 0, %s8, %s6
  loop: start=0, step=1, limit=4
  $region2: #{conv_gru_cell.1} parent=0 // loop_pre_header
    _
  $region3: #{conv_gru_cell.1} parent=0 // loop_header
    %s11 = sphi 0, %s15
    %p12 = scmp.ge.s32.totalorder %s11, 4
    %s21 = sphi 0, %s23
    %s24 = sphi 0, %s21
    %s25 = sphi 0, %s24
    %s41 = sphi 0, %s25
    %s47 = sphi 0, %s49
    %s50 = sphi 0, %s47
    %s51 = sphi 0, %s50
    %s67 = sphi 0, %s51
    %s71 = sphi 0, %s71
    %s73 = sphi 0, %s71
    %s74 = sphi 0, %s73
    %s88 = sphi 0, %s74
    %s92 = sphi 0, %s92
    %s94 = sphi 0, %s92
    %s95 = sphi 0, %s94
    %s109 = sphi 0, %s95
    %s113 = sphi 0, %s113
    %s115 = sphi 0, %s113
    %s116 = sphi 0, %s115
    %s130 = sphi 0, %s116
    %s136 = sphi 0, %s138
    %s139 = sphi 0, %s136
    %s140 = sphi 0, %s139
    %s156 = sphi 0, %s140
  $region4: #{conv_gru_cell.1} parent=0 // loop_header_branch
    %14 = sbr.rel (%p12) target = $region8
  $region5: #{conv_gru_cell.1} parent=0 // loop_body
    %s16 = ssub.s32 %s11, 1
    %s17 = ssub.s32 %s11, 2
    %s18 = sadd.s32 %s11, 1
    %s19 = ssub.s32 %s11, %s18
    %p20 = scmp.eq.s32.totalorder %s19, 0
    %s22 = sadd.s32 %s21, 1
    %s23 = scalar_select %p20, %s21, %s22
    %p26 = pneg %p20
    %p27 = scmp.eq.s32.totalorder %s11, 1
    %p28 = por %p26, %p27
    %p29 = scmp.ne.s32.totalorder %s21, %s24
    %p30 = scmp.eq.s32.totalorder %s11, 0
    %p31 = por %p29, %p30
    %p32 = scmp.ne.s32.totalorder %s21, %s24
    %p33 = scmp.eq.s32.totalorder %s16, 1
    %p34 = por %p32, %p33
    %p35 = scmp.ne.s32.totalorder %s24, %s25
    %p36 = scmp.eq.s32.totalorder %s16, 0
    %p37 = por %p35, %p36
    %p38 = scmp.ne.s32.totalorder %s24, %s25
    %p39 = scmp.eq.s32.totalorder %s17, 1
    %p40 = por %p38, %p39
    %p42 = scmp.ne.s32.totalorder %s25, %s41
    %p43 = scmp.eq.s32.totalorder %s17, 0
    %p44 = por %p42, %p43
    %s45 = ssub.s32 %s11, %s18
    %p46 = scmp.eq.s32.totalorder %s45, 0
    %s48 = sadd.s32 %s47, 1
    %s49 = scalar_select %p46, %s47, %s48
    %p52 = pneg %p46
    %p53 = scmp.eq.s32.totalorder %s11, 1
    %p54 = por %p52, %p53
    %p55 = scmp.ne.s32.totalorder %s47, %s50
    %p56 = scmp.eq.s32.totalorder %s11, 0
    %p57 = por %p55, %p56
    %p58 = scmp.ne.s32.totalorder %s47, %s50
    %p59 = scmp.eq.s32.totalorder %s16, 1
    %p60 = por %p58, %p59
    %p61 = scmp.ne.s32.totalorder %s50, %s51
    %p62 = scmp.eq.s32.totalorder %s16, 0
    %p63 = por %p61, %p62
    %p64 = scmp.ne.s32.totalorder %s50, %s51
    %p65 = scmp.eq.s32.totalorder %s17, 1
    %p66 = por %p64, %p65
    %p68 = scmp.ne.s32.totalorder %s51, %s67
    %p69 = scmp.eq.s32.totalorder %s17, 0
    %p70 = por %p68, %p69
    %s72 = sadd.s32 %s71, 1
    %p75 = scmp.eq.s32.totalorder %s11, 1
    %p76 = scmp.ne.s32.totalorder %s71, %s73
    %p77 = scmp.eq.s32.totalorder %s11, 0
    %p78 = por %p76, %p77
    %p79 = scmp.ne.s32.totalorder %s71, %s73
    %p80 = scmp.eq.s32.totalorder %s16, 1
    %p81 = por %p79, %p80
    %p82 = scmp.ne.s32.totalorder %s73, %s74
    %p83 = scmp.eq.s32.totalorder %s16, 0
    %p84 = por %p82, %p83
    %p85 = scmp.ne.s32.totalorder %s73, %s74
    %p86 = scmp.eq.s32.totalorder %s17, 1
    %p87 = por %p85, %p86
    %p89 = scmp.ne.s32.totalorder %s74, %s88
    %p90 = scmp.eq.s32.totalorder %s17, 0
    %p91 = por %p89, %p90
    %s93 = sadd.s32 %s92, 1
    %p96 = scmp.eq.s32.totalorder %s11, 1
    %p97 = scmp.ne.s32.totalorder %s92, %s94
    %p98 = scmp.eq.s32.totalorder %s11, 0
    %p99 = por %p97, %p98
    %p100 = scmp.ne.s32.totalorder %s92, %s94
    %p101 = scmp.eq.s32.totalorder %s16, 1
    %p102 = por %p100, %p101
    %p103 = scmp.ne.s32.totalorder %s94, %s95
    %p104 = scmp.eq.s32.totalorder %s16, 0
    %p105 = por %p103, %p104
    %p106 = scmp.ne.s32.totalorder %s94, %s95
    %p107 = scmp.eq.s32.totalorder %s17, 1
    %p108 = por %p106, %p107
    %p110 = scmp.ne.s32.totalorder %s95, %s109
    %p111 = scmp.eq.s32.totalorder %s17, 0
    %p112 = por %p110, %p111
    %s114 = sadd.s32 %s113, 1
    %p117 = scmp.eq.s32.totalorder %s11, 1
    %p118 = scmp.ne.s32.totalorder %s113, %s115
    %p119 = scmp.eq.s32.totalorder %s11, 0
    %p120 = por %p118, %p119
    %p121 = scmp.ne.s32.totalorder %s113, %s115
    %p122 = scmp.eq.s32.totalorder %s16, 1
    %p123 = por %p121, %p122
    %p124 = scmp.ne.s32.totalorder %s115, %s116
    %p125 = scmp.eq.s32.totalorder %s16, 0
    %p126 = por %p124, %p125
    %p127 = scmp.ne.s32.totalorder %s115, %s116
    %p128 = scmp.eq.s32.totalorder %s17, 1
    %p129 = por %p127, %p128
    %p131 = scmp.ne.s32.totalorder %s116, %s130
    %p132 = scmp.eq.s32.totalorder %s17, 0
    %p133 = por %p131, %p132
    %s134 = ssub.s32 %s11, %s18
    %p135 = scmp.eq.s32.totalorder %s134, 0
    %s137 = sadd.s32 %s136, 1
    %s138 = scalar_select %p135, %s136, %s137
    %p141 = pneg %p135
    %p142 = scmp.eq.s32.totalorder %s11, 1
    %p143 = por %p141, %p142
    %p144 = scmp.ne.s32.totalorder %s136, %s139
    %p145 = scmp.eq.s32.totalorder %s11, 0
    %p146 = por %p144, %p145
    %p147 = scmp.ne.s32.totalorder %s136, %s139
    %p148 = scmp.eq.s32.totalorder %s16, 1
    %p149 = por %p147, %p148
    %p150 = scmp.ne.s32.totalorder %s139, %s140
    %p151 = scmp.eq.s32.totalorder %s16, 0
    %p152 = por %p150, %p151
    %p153 = scmp.ne.s32.totalorder %s139, %s140
    %p154 = scmp.eq.s32.totalorder %s17, 1
    %p155 = por %p153, %p154
    %p157 = scmp.ne.s32.totalorder %s140, %s156
    %p158 = scmp.eq.s32.totalorder %s17, 0
    %p159 = por %p157, %p158
    %p160 = scmp.le.s32.totalorder 1, %s11
    %p161 = scmp.lt.s32.totalorder %s11, 3
    %p162 = pnand %p160, %p161
    %p163 = pneg %p162
    // Predicated region
    $region9: #{conv_gru_cell.1} parent=5 // pred_check
      _
    $region10: #{conv_gru_cell.1} parent=5 // pred_check_branch
      %165 = sbr.rel (%p162) target = $region12
    $region11: #{conv_gru_cell.1} parent=5 // pred_region
      %s166 = ssub.s32 %s11, 1
      // Predicated region
      $region13: #{conv_gru_cell.1} parent=11 // pred_check
        %p167 = pneg %p84
      $region14: #{conv_gru_cell.1} parent=11 // pred_check_branch
        %169 = sbr.rel (%p167) target = $region16
      $region15: #{conv_gru_cell.1} parent=11 // pred_region
        _
      $region16: #{conv_gru_cell.1} parent=11 // pred_fallthru
        _
      // Predicated region
      $region17: #{conv_gru_cell.1} parent=11 // pred_check
        %p170 = pneg %p105
      $region18: #{conv_gru_cell.1} parent=11 // pred_check_branch
        %172 = sbr.rel (%p170) target = $region20
      $region19: #{conv_gru_cell.1} parent=11 // pred_region
        _
      $region20: #{conv_gru_cell.1} parent=11 // pred_fallthru
        _
      // Predicated region
      $region21: #{conv_gru_cell.1} parent=11 // pred_check
        %p173 = pneg %p126
      $region22: #{conv_gru_cell.1} parent=11 // pred_check_branch
        %175 = sbr.rel (%p173) target = $region24
      $region23: #{conv_gru_cell.1} parent=11 // pred_region
        _
      $region24: #{conv_gru_cell.1} parent=11 // pred_fallthru
        _
    $region12: #{conv_gru_cell.1} parent=5 // pred_fallthru
      _
    %p176 = scmp.lt.s32.totalorder %s11, 2
    // Predicated region
    $region25: #{conv_gru_cell.1} parent=5 // pred_check
      %p177 = pneg %p176
    $region26: #{conv_gru_cell.1} parent=5 // pred_check_branch
      %179 = sbr.rel (%p177) target = $region28
    $region27: #{conv_gru_cell.1} parent=5 // pred_region
      // Predicated region
      $region29: #{conv_gru_cell.1} parent=27 // pred_check
        %p180 = pneg %p31
      $region30: #{conv_gru_cell.1} parent=27 // pred_check_branch
        %182 = sbr.rel (%p180) target = $region32
      $region31: #{conv_gru_cell.1} parent=27 // pred_region
        %s183 = smul.u32 2, %s11
        %p184 = scmp.lt.s32.totalorder %s183, 3
        %s185 = scalar_select %p184, %s183, 3
        %s186 = smul.addr %s185, 4
        %s187 = scalar_lea.vmem %s0, %s186
        %s188 = smul.u32 2, %s11
      $region32: #{conv_gru_cell.1} parent=27 // pred_fallthru
        _
      // Predicated region
      $region33: #{conv_gru_cell.1} parent=27 // pred_check
        %p189 = pneg %p57
      $region34: #{conv_gru_cell.1} parent=27 // pred_check_branch
        %191 = sbr.rel (%p189) target = $region36
      $region35: #{conv_gru_cell.1} parent=27 // pred_region
        %s192 = smul.u32 2, %s11
        %p193 = scmp.lt.s32.totalorder %s192, 3
        %s194 = scalar_select %p193, %s192, 3
        %s195 = smul.addr %s194, 4
        %s196 = scalar_lea.vmem %s1, %s195
        %s197 = smul.u32 2, %s11
      $region36: #{conv_gru_cell.1} parent=27 // pred_fallthru
        _
    $region28: #{conv_gru_cell.1} parent=5 // pred_fallthru
      _
    %p198 = scmp.le.s32.totalorder 1, %s11
    %p199 = scmp.lt.s32.totalorder %s11, 3
    %p200 = pnand %p198, %p199
    %p201 = pneg %p200
    // Predicated region
    $region37: #{conv_gru_cell.1} parent=5 // pred_check
      _
    $region38: #{conv_gru_cell.1} parent=5 // pred_check_branch
      %203 = sbr.rel (%p200) target = $region40
    $region39: #{conv_gru_cell.1} parent=5 // pred_region
      %s204 = ssub.s32 %s11, 1
      %s205 = smul.u32 2, %s16
      %p206 = scmp.lt.s32.totalorder %s205, 3
      %s207 = scalar_select %p206, %s205, 3
      %s208 = smul.addr %s207, 4
      %s209 = scalar_lea.vmem %s0, %s208
      %p210 = pneg %p37
      %p211 = pneg %p34
      %s212 = smul.u32 2, %s16
      %p213 = scmp.lt.s32.totalorder %s212, 3
      %s214 = scalar_select %p213, %s212, 3
      %s215 = smul.addr %s214, 4
      %s216 = scalar_lea.vmem %s1, %s215
      %p217 = pneg %p63
      %p218 = pneg %p60
      %p219 = pneg %p84
      %p220 = pneg %p81
      %p221 = pneg %p105
      %p222 = pneg %p102
      %p223 = pneg %p126
      %p224 = pneg %p123
      %p225 = pneg %p152
      %p226 = pneg %p149
      %s227 = smul.u32 2, %s16
      %p228 = scmp.lt.s32.totalorder %s227, 3
      %s229 = scalar_select %p228, %s227, 3
      %s230 = smul.addr %s229, 4
      %s231 = scalar_lea.vmem %s5, %s230
      %s232 = smul.u32 2, %s16
      %p233 = scmp.lt.s32.totalorder %s232, 3
      %s234 = scalar_select %p233, %s232, 3
      %s235 = smul.addr %s234, 4
      %s236 = scalar_lea.vmem %s0, %s235
      %s237 = smul.u32 2, %s16
      %s238 = smul.u32 2, %s16
      %p239 = scmp.lt.s32.totalorder %s238, 3
      %s240 = scalar_select %p239, %s238, 3
      %s241 = smul.addr %s240, 4
      %s242 = scalar_lea.vmem %s1, %s241
      %s243 = smul.u32 2, %s16
      %s244 = smul.u32 2, %s16
      %p245 = scmp.lt.s32.totalorder %s244, 3
      %s246 = scalar_select %p245, %s244, 3
      %s247 = smul.addr %s246, 4
      %s248 = scalar_lea.vmem %s5, %s247
      %s249 = smul.u32 2, %s16
      %v250 = vlaneseq
      %v251 = vand.u32 %v250, 127
      %v252 = vadd.s32 %v251, 128
      %vm253 = vcmp.lt.s32.totalorder %v251, 0
      %v254 = vsub.s32 0, %v251
      %v255 = vsel %vm253, %v254, %v251
      %v256 = vshrl.u32 %v255, 4
      %v257 = vand.u32 %v255, 15
      %v258 = vsub.s32 0, %v257
      %v259 = vsel %vm253, %v258, %v257
      %vm260 = vcmp.lt.s32.totalorder %v252, 0
      %v261 = vsub.s32 0, %v252
      %v262 = vsel %vm260, %v261, %v252
      %v263 = vshrl.u32 %v262, 4
      %v264 = vand.u32 %v262, 15
      %v265 = vsub.s32 0, %v264
      %v266 = vsel %vm260, %v265, %v264
      %vm267 = vcmp.ne.s32.totalorder %v259, 0
      %vm268 = vcmp.ne.s32.totalorder %v266, 0
      %vm269 = vcmp.lt.s32.totalorder %v259, 0
      %vm270 = vcmp.lt.s32.totalorder %v266, 0
      %vm271 = vmand %vm269, %vm267
      %vm272 = vmand %vm270, %vm268
      %v273 = vadd.s32 %v259, 16
      %v274 = vadd.s32 %v266, 16
      %v275 = vsel %vm271, %v273, %v259
      %v276 = vsel %vm272, %v274, %v266
      %vm277 = vcmp.ge.s32.totalorder %v275, 1
      %vm278 = vcmp.ge.s32.totalorder %v276, 1
      %vm279 = vcmp.le.s32.totalorder %v275, 14
      %vm280 = vcmp.le.s32.totalorder %v276, 14
      %281 = vst [vmem:[#allocation2] sm:$0xff] 0.0
      %282 = vst [vmem:[#allocation2 + $0x18] sm:$0xff] 0.0
      %v283 = vld [vmem:[%s236] sm:$0xff]
      %v284 = vld [vmem:[%s242] sm:$0xff]
      %v286 = vcombine.high %v283, %v283
      %288 = vst [vmem:[#allocation2 + $0x8] sm:$0xf] %v283
      %289 = vst [vmem:[#allocation2 + $0x10] sm:$0xf] %v286
      %v291 = vcombine.low %v284, %v284
      %293 = vst [vmem:[#allocation2 + $0x8] sm:$0xf0] %v291
      %294 = vst [vmem:[#allocation2 + $0x10] sm:$0xf0] %v284
      %v295 = vld [vmem:[#allocation2] sm:$0xff]
      %v296 = vld [vmem:[#allocation2 + $0x8] sm:$0xff]
      %v297 = vld [vmem:[#allocation2 + $0x10] sm:$0xff]
      %301 = vrot.lane.b32.xlu0 %v295, 17
      %v302 = vpop.permute.xlu0 %301
      %303 = vrot.lane.b32.xlu0 %v296, 17
      %v304 = vpop.permute.xlu0 %303
      %305 = vrot.lane.b32.xlu0 %v297, 17
      %v306 = vpop.permute.xlu0 %305
      %vm307 = vcmask 138240
      %v308 = vsel %vm307, %v302, %v304
      %v309 = vsel %vm307, %v304, %v306
      %v312 = vsel %vm277, %v308, 0.0
      %v313 = vsel %vm278, %v309, 0.0
      %314 = vst [vmem:[#allocation3] sm:$0xff] %v312
      %315 = vst [vmem:[#allocation3 + $0x8] sm:$0xff] %v313
      %v316 = vld [vmem:[#allocation2] sm:$0xff]
      %v317 = vld [vmem:[#allocation2 + $0x8] sm:$0xff]
      %v318 = vld [vmem:[#allocation2 + $0x10] sm:$0xff]
      %322 = vrot.lane.b32.xlu0 %v316, 16
      %v323 = vpop.permute.xlu0 %322
      %324 = vrot.lane.b32.xlu0 %v317, 16
      %v325 = vpop.permute.xlu0 %324
      %326 = vrot.lane.b32.xlu0 %v318, 16
      %v327 = vpop.permute.xlu0 %326
      %vm328 = vcmask 130048
      %v329 = vsel %vm328, %v323, %v325
      %v330 = vsel %vm328, %v325, %v327
      %333 = vst [vmem:[#allocation3 + $0x10] sm:$0xff] %v329
      %334 = vst [vmem:[#allocation3 + $0x18] sm:$0xff] %v330
      %v335 = vld [vmem:[#allocation2] sm:$0xff]
      %v336 = vld [vmem:[#allocation2 + $0x8] sm:$0xff]
      %v337 = vld [vmem:[#allocation2 + $0x10] sm:$0xff]
      %341 = vrot.lane.b32.xlu0 %v335, 15
      %v342 = vpop.permute.xlu0 %341
      %343 = vrot.lane.b32.xlu0 %v336, 15
      %v344 = vpop.permute.xlu0 %343
      %345 = vrot.lane.b32.xlu0 %v337, 15
      %v346 = vpop.permute.xlu0 %345
      %vm347 = vcmask 121856
      %v348 = vsel %vm347, %v342, %v344
      %v349 = vsel %vm347, %v344, %v346
      %v352 = vsel %vm279, %v348, 0.0
      %v353 = vsel %vm280, %v349, 0.0
      %354 = vst [vmem:[#allocation3 + $0x20] sm:$0xff] %v352
      %355 = vst [vmem:[#allocation3 + $0x28] sm:$0xff] %v353
      %v356 = vld [vmem:[#allocation2] sm:$0xff]
      %v357 = vld [vmem:[#allocation2 + $0x8] sm:$0xff]
      %v358 = vld [vmem:[#allocation2 + $0x10] sm:$0xff]
      %362 = vrot.lane.b32.xlu0 %v356, 1
      %v363 = vpop.permute.xlu0 %362
      %364 = vrot.lane.b32.xlu0 %v357, 1
      %v365 = vpop.permute.xlu0 %364
      %366 = vrot.lane.b32.xlu0 %v358, 1
      %v367 = vpop.permute.xlu0 %366
      %vm368 = vcmask 7168
      %v369 = vsel %vm368, %v363, %v365
      %v370 = vsel %vm368, %v365, %v367
      %v373 = vsel %vm277, %v369, 0.0
      %v374 = vsel %vm278, %v370, 0.0
      %375 = vst [vmem:[#allocation3 + $0x30] sm:$0xff] %v373
      %376 = vst [vmem:[#allocation3 + $0x38] sm:$0xff] %v374
      %v377 = vld [vmem:[#allocation2 + $0x8] sm:$0xff]
      %v378 = vld [vmem:[#allocation2 + $0x10] sm:$0xff]
      %379 = vst [vmem:[#allocation3 + $0x40] sm:$0xff] %v377
      %380 = vst [vmem:[#allocation3 + $0x48] sm:$0xff] %v378
      %v381 = vld [vmem:[#allocation2 + $0x8] sm:$0xff]
      %v382 = vld [vmem:[#allocation2 + $0x10] sm:$0xff]
      %v383 = vld [vmem:[#allocation2 + $0x18] sm:$0xff]
      %387 = vrot.lane.b32.xlu0 %v381, 127
      %v388 = vpop.permute.xlu0 %387
      %389 = vrot.lane.b32.xlu0 %v382, 127
      %v390 = vpop.permute.xlu0 %389
      %391 = vrot.lane.b32.xlu0 %v383, 127
      %v392 = vpop.permute.xlu0 %391
      %vm393 = vcmask 1039360
      %v394 = vsel %vm393, %v388, %v390
      %v395 = vsel %vm393, %v390, %v392
      %v398 = vsel %vm279, %v394, 0.0
      %v399 = vsel %vm280, %v395, 0.0
      %400 = vst [vmem:[#allocation3 + $0x50] sm:$0xff] %v398
      %401 = vst [vmem:[#allocation3 + $0x58] sm:$0xff] %v399
      %v402 = vld [vmem:[#allocation2 + $0x8] sm:$0xff]
      %v403 = vld [vmem:[#allocation2 + $0x10] sm:$0xff]
      %v404 = vld [vmem:[#allocation2 + $0x18] sm:$0xff]
      %408 = vrot.lane.b32.xlu0 %v402, 113
      %v409 = vpop.permute.xlu0 %408
      %410 = vrot.lane.b32.xlu0 %v403, 113
      %v411 = vpop.permute.xlu0 %410
      %412 = vrot.lane.b32.xlu0 %v404, 113
      %v413 = vpop.permute.xlu0 %412
      %vm414 = vcmask 924672
      %v415 = vsel %vm414, %v409, %v411
      %v416 = vsel %vm414, %v411, %v413
      %v419 = vsel %vm277, %v415, 0.0
      %v420 = vsel %vm278, %v416, 0.0
      %421 = vst [vmem:[#allocation3 + $0x60] sm:$0xff] %v419
      %422 = vst [vmem:[#allocation3 + $0x68] sm:$0xff] %v420
      %v423 = vld [vmem:[#allocation2 + $0x8] sm:$0xff]
      %v424 = vld [vmem:[#allocation2 + $0x10] sm:$0xff]
      %v425 = vld [vmem:[#allocation2 + $0x18] sm:$0xff]
      %429 = vrot.lane.b32.xlu0 %v423, 112
      %v430 = vpop.permute.xlu0 %429
      %431 = vrot.lane.b32.xlu0 %v424, 112
      %v432 = vpop.permute.xlu0 %431
      %433 = vrot.lane.b32.xlu0 %v425, 112
      %v434 = vpop.permute.xlu0 %433
      %vm435 = vcmask 916480
      %v436 = vsel %vm435, %v430, %v432
      %v437 = vsel %vm435, %v432, %v434
      %440 = vst [vmem:[#allocation3 + $0x70] sm:$0xff] %v436
      %441 = vst [vmem:[#allocation3 + $0x78] sm:$0xff] %v437
      %v442 = vld [vmem:[#allocation2 + $0x8] sm:$0xff]
      %v443 = vld [vmem:[#allocation2 + $0x10] sm:$0xff]
      %v444 = vld [vmem:[#allocation2 + $0x18] sm:$0xff]
      %448 = vrot.lane.b32.xlu0 %v442, 111
      %v449 = vpop.permute.xlu0 %448
      %450 = vrot.lane.b32.xlu0 %v443, 111
      %v451 = vpop.permute.xlu0 %450
      %452 = vrot.lane.b32.xlu0 %v444, 111
      %v453 = vpop.permute.xlu0 %452
      %vm454 = vcmask 908288
      %v455 = vsel %vm454, %v449, %v451
      %v456 = vsel %vm454, %v451, %v453
      %v459 = vsel %vm279, %v455, 0.0
      %v460 = vsel %vm280, %v456, 0.0
      %461 = vst [vmem:[#allocation3 + $0x80] sm:$0xff] %v459
      %462 = vst [vmem:[#allocation3 + $0x88] sm:$0xff] %v460
      %v463 = vld [vmem:[%s2] sm:$0xff]
      %v464 = vld [vmem:[%s2 + $0x8] sm:$0xf]
      %v465 = vld [vmem:[#allocation3] sm:$0xff]
      %v466 = vld [vmem:[#allocation3 + $0x8] sm:$0xff]
      %v467 = vld [vmem:[#allocation3 + $0x10] sm:$0xff]
      %v468 = vld [vmem:[#allocation3 + $0x18] sm:$0xff]
      %v469 = vld [vmem:[#allocation3 + $0x20] sm:$0xff]
      %v470 = vld [vmem:[#allocation3 + $0x28] sm:$0xff]
      %v471 = vld [vmem:[#allocation3 + $0x30] sm:$0xff]
      %v472 = vld [vmem:[#allocation3 + $0x38] sm:$0xff]
      %v473 = vld [vmem:[#allocation3 + $0x40] sm:$0xff]
      %v474 = vld [vmem:[#allocation3 + $0x48] sm:$0xff]
      %v475 = vld [vmem:[#allocation3 + $0x50] sm:$0xff]
      %v476 = vld [vmem:[#allocation3 + $0x58] sm:$0xff]
      %v477 = vld [vmem:[#allocation3 + $0x60] sm:$0xff]
      %v478 = vld [vmem:[#allocation3 + $0x68] sm:$0xff]
      %v479 = vld [vmem:[#allocation3 + $0x70] sm:$0xff]
      %v480 = vld [vmem:[#allocation3 + $0x78] sm:$0xff]
      %v481 = vld [vmem:[#allocation3 + $0x80] sm:$0xff]
      %v482 = vld [vmem:[#allocation3 + $0x88] sm:$0xff]
      %v483 = vld [vmem:[%s3] sm:$0xff]
      %v484 = vld [vmem:[%s3 + $0x8] sm:$0xf]
      %486 = vset.pattern.permute.xlu0 0
      %487 = vperm.xlu0 %486, %v483
      %v488 = vpop.permute.xlu0 %487
      %491 = vset.pattern.permute.xlu0 0
      %492 = vperm.xlu0 %491, %v484
      %v493 = vpop.permute.xlu0 %492
      %vm495 = vcmask 588800
      %v497 = vsel %vm495, %v463, 0
      %v500 = vsel %vm495, %v464, 0
      %502 = vmatprep.subr.mxu0 %v466
      %503 = vmatpush1.msra.mxu0 %v465
      %504 = vmatprep.subr.mxu0 %v468
      %505 = vmatpush1.msra.mxu0 %v467
      %506 = vmatprep.subr.mxu0 %v470
      %507 = vmatpush1.msra.mxu0 %v469
      %508 = vmatprep.subr.mxu0 %v472
      %509 = vmatpush1.msra.mxu0 %v471
      %510 = vmatprep.subr.mxu0 %v474
      %511 = vmatpush1.msra.mxu0 %v473
      %512 = vmatprep.subr.mxu0 %v476
      %513 = vmatpush1.msra.mxu0 %v475
      %514 = vmatprep.subr.mxu0 %v478
      %515 = vmatpush1.msra.mxu0 %v477
      %516 = vmatprep.subr.mxu0 %v480
      %517 = vmatpush1.msra.mxu0 %v479
      %518 = vmatprep.subr.mxu0 %v482
      %519 = vmatpush1.msra.mxu0 %v481
      %520 = vmatprep.subr.mxu0 0.0
      %521 = vmatpush1.msra.mxu0 0.0
      %522 = vmatprep.subr.mxu0 0.0
      %523 = vmatpush1.msra.mxu0 0.0
      %524 = vmatprep.subr.mxu0 0.0
      %525 = vmatpush1.msra.mxu0 0.0
      %526 = vmatprep.subr.mxu0 0.0
      %527 = vmatpush1.msra.mxu0 0.0
      %528 = vmatprep.subr.mxu0 0.0
      %529 = vmatpush1.msra.mxu0 0.0
      %530 = vmatprep.subr.mxu0 0.0
      %531 = vmatpush1.msra.mxu0 0.0
      %532 = vmatprep.subr.mxu0 0.0
      %533 = vmatpush1.msra.mxu0 0.0
      %534 = vmatprep.subr.mxu0 0.0
      %535 = vmatpush1.msra.mxu0 0.0
      %536 = vmatprep.subr.mxu0 0.0
      %537 = vmatpush1.msra.mxu0 0.0
      %538 = vmatprep.subr.mxu0 0.0
      %539 = vmatpush1.msra.mxu0 0.0
      %540 = vmatprep.subr.mxu0 0.0
      %541 = vmatpush1.msra.mxu0 0.0
      %542 = vmatprep.subr.mxu0 0.0
      %543 = vmatpush1.msra.mxu0 0.0
      %544 = vmatprep.subr.mxu0 0.0
      %545 = vmatpush1.msra.mxu0 0.0
      %546 = vmatprep.subr.mxu0 0.0
      %547 = vmatpush1.msra.mxu0 0.0
      %548 = vmatprep.subr.mxu0 0.0
      %549 = vmatpush1.msra.mxu0 0.0
      %550 = vmatprep.subr.mxu0 0.0
      %551 = vmatpush1.msra.mxu0 0.0
      %552 = vmatprep.subr.mxu0 0.0
      %553 = vmatpush1.msra.mxu0 0.0
      %554 = vmatprep.subr.mxu0 0.0
      %555 = vmatpush1.msra.mxu0 0.0
      %556 = vmatprep.subr.mxu0 0.0
      %557 = vmatpush1.msra.mxu0 0.0
      %558 = vmatprep.subr.mxu0 0.0
      %559 = vmatpush1.msra.mxu0 0.0
      %560 = vmatprep.subr.mxu0 0.0
      %561 = vmatpush1.msra.mxu0 0.0
      %562 = vmatprep.subr.mxu0 0.0
      %563 = vmatpush1.msra.mxu0 0.0
      %564 = vmatprep.subr.mxu0 0.0
      %565 = vmatpush1.msra.mxu0 0.0
      %566 = vmatprep.mubr.f32.mxu0 0.0
      %567 = vmatmul.mubr.f32.gmra.mrb[0].mxu0 %v497
      %v568 = vpop.f32.mrb[0].mxu0
      %v569 = vadd.f32 %v488, %v568
      %v570 = vpop.f32.mrb[0].mxu0
      %v571 = vadd.f32 %v488, %v570
      %572 = vmatprep.mubr.f32.mxu0 0.0
      %573 = vmatmul.mubr.f32.gmra.mrb[0].mxu0 %v500
      %v574 = vpop.f32.mrb[0].mxu0
      %v575 = vadd.f32 %v493, %v574
      %v576 = vpop.f32.mrb[0].mxu0
      %v577 = vadd.f32 %v493, %v576
      %578 = vdwg.mxu0
      %v579 = vxor.u32 %v569, 2147483648
      %v580 = vxor.u32 %v571, 2147483648
      %v581 = vmul.f32 %v579, 1.442695
      %v582 = vpow.pop %v581
      %v583 = vmul.f32 %v580, 1.442695
      %v584 = vpow.pop %v583
      %v585 = vadd.f32 %v582, 1.0
      %v586 = vadd.f32 %v584, 1.0
      %v587 = vrcp.pop %v585
      %v588 = vmul.f32 1.0, %v587
      %v589 = vrcp.pop %v586
      %v590 = vmul.f32 1.0, %v589
      %v591 = vcombine.high %v284, %v284
      %v593 = vmul.f32 %v588, %v284
      %v594 = vmul.f32 %v590, %v591
      %v597 = vrot.slane %v593, 4
      %v598 = vrot.slane %v594, 4
      %601 = vst [vmem:[#allocation2 + $0x8] sm:$0xf0] %v597
      %602 = vst [vmem:[#allocation2 + $0x10] sm:$0xf0] %v598
      %v603 = vld [vmem:[#allocation2] sm:$0xf0]
      %v604 = vld [vmem:[#allocation2 + $0x8] sm:$0xf0]
      %v605 = vld [vmem:[#allocation2 + $0x10] sm:$0xf0]
      %v609 = vrot.slane %v603, 4
      %v610 = vrot.slane %v604, 4
      %v611 = vrot.slane %v605, 4
      %612 = vrot.lane.b32.xlu0 %v609, 17
      %v613 = vpop.permute.xlu0 %612
      %614 = vrot.lane.b32.xlu0 %v610, 17
      %v615 = vpop.permute.xlu0 %614
      %616 = vrot.lane.b32.xlu0 %v611, 17
      %v617 = vpop.permute.xlu0 %616
      %v618 = vsel %vm307, %v613, %v615
      %v619 = vsel %vm307, %v615, %v617
      %v622 = vsel %vm277, %v618, 0.0
      %v623 = vsel %vm278, %v619, 0.0
      %624 = vst [vmem:[#allocation4] sm:$0xf] %v622
      %625 = vst [vmem:[#allocation4 + $0x8] sm:$0xf] %v623
      %v626 = vld [vmem:[#allocation2] sm:$0xf0]
      %v627 = vld [vmem:[#allocation2 + $0x8] sm:$0xf0]
      %v628 = vld [vmem:[#allocation2 + $0x10] sm:$0xf0]
      %632 = vrot.lane.b32.xlu0 %v626, 16
      %v633 = vpop.permute.xlu0 %632
      %634 = vrot.lane.b32.xlu0 %v627, 16
      %v635 = vpop.permute.xlu0 %634
      %636 = vrot.lane.b32.xlu0 %v628, 16
      %v637 = vpop.permute.xlu0 %636
      %v638 = vsel %vm328, %v633, %v635
      %v639 = vsel %vm328, %v635, %v637
      %642 = vst [vmem:[#allocation4] sm:$0xf0] %v638
      %643 = vst [vmem:[#allocation4 + $0x8] sm:$0xf0] %v639
      %v644 = vld [vmem:[#allocation2] sm:$0xf0]
      %v645 = vld [vmem:[#allocation2 + $0x8] sm:$0xf0]
      %v646 = vld [vmem:[#allocation2 + $0x10] sm:$0xf0]
      %v650 = vrot.slane %v644, 4
      %v651 = vrot.slane %v645, 4
      %v652 = vrot.slane %v646, 4
      %653 = vrot.lane.b32.xlu0 %v650, 15
      %v654 = vpop.permute.xlu0 %653
      %655 = vrot.lane.b32.xlu0 %v651, 15
      %v656 = vpop.permute.xlu0 %655
      %657 = vrot.lane.b32.xlu0 %v652, 15
      %v658 = vpop.permute.xlu0 %657
      %v659 = vsel %vm347, %v654, %v656
      %v660 = vsel %vm347, %v656, %v658
      %v663 = vsel %vm279, %v659, 0.0
      %v664 = vsel %vm280, %v660, 0.0
      %665 = vst [vmem:[#allocation4 + $0x10] sm:$0xf] %v663
      %666 = vst [vmem:[#allocation4 + $0x18] sm:$0xf] %v664
      %v667 = vld [vmem:[#allocation2] sm:$0xf0]
      %v668 = vld [vmem:[#allocation2 + $0x8] sm:$0xf0]
      %v669 = vld [vmem:[#allocation2 + $0x10] sm:$0xf0]
      %v673 = vrot.slane %v667, 4
      %v674 = vrot.slane %v668, 4
      %v675 = vrot.slane %v669, 4
      %676 = vrot.lane.b32.xlu0 %v673, 1
      %v677 = vpop.permute.xlu0 %676
      %678 = vrot.lane.b32.xlu0 %v674, 1
      %v679 = vpop.permute.xlu0 %678
      %680 = vrot.lane.b32.xlu0 %v675, 1
      %v681 = vpop.permute.xlu0 %680
      %v682 = vsel %vm368, %v677, %v679
      %v683 = vsel %vm368, %v679, %v681
      %v686 = vsel %vm277, %v682, 0.0
      %v687 = vsel %vm278, %v683, 0.0
      %v690 = vrot.slane %v686, 4
      %v691 = vrot.slane %v687, 4
      %694 = vst [vmem:[#allocation4 + $0x10] sm:$0xf0] %v690
      %695 = vst [vmem:[#allocation4 + $0x18] sm:$0xf0] %v691
      %v696 = vld [vmem:[#allocation2 + $0x8] sm:$0xf0]
      %v697 = vld [vmem:[#allocation2 + $0x10] sm:$0xf0]
      %v700 = vrot.slane %v696, 4
      %v701 = vrot.slane %v697, 4
      %704 = vst [vmem:[#allocation4 + $0x20] sm:$0xf] %v700
      %705 = vst [vmem:[#allocation4 + $0x28] sm:$0xf] %v701
      %v706 = vld [vmem:[#allocation2 + $0x8] sm:$0xf0]
      %v707 = vld [vmem:[#allocation2 + $0x10] sm:$0xf0]
      %v708 = vld [vmem:[#allocation2 + $0x18] sm:$0xf0]
      %v712 = vrot.slane %v706, 4
      %v713 = vrot.slane %v707, 4
      %v714 = vrot.slane %v708, 4
      %715 = vrot.lane.b32.xlu0 %v712, 127
      %v716 = vpop.permute.xlu0 %715
      %717 = vrot.lane.b32.xlu0 %v713, 127
      %v718 = vpop.permute.xlu0 %717
      %719 = vrot.lane.b32.xlu0 %v714, 127
      %v720 = vpop.permute.xlu0 %719
      %v721 = vsel %vm393, %v716, %v718
      %v722 = vsel %vm393, %v718, %v720
      %v725 = vsel %vm279, %v721, 0.0
      %v726 = vsel %vm280, %v722, 0.0
      %v729 = vrot.slane %v725, 4
      %v730 = vrot.slane %v726, 4
      %733 = vst [vmem:[#allocation4 + $0x20] sm:$0xf0] %v729
      %734 = vst [vmem:[#allocation4 + $0x28] sm:$0xf0] %v730
      %v735 = vld [vmem:[#allocation2 + $0x8] sm:$0xf0]
      %v736 = vld [vmem:[#allocation2 + $0x10] sm:$0xf0]
      %v737 = vld [vmem:[#allocation2 + $0x18] sm:$0xf0]
      %v741 = vrot.slane %v735, 4
      %v742 = vrot.slane %v736, 4
      %v743 = vrot.slane %v737, 4
      %744 = vrot.lane.b32.xlu0 %v741, 113
      %v745 = vpop.permute.xlu0 %744
      %746 = vrot.lane.b32.xlu0 %v742, 113
      %v747 = vpop.permute.xlu0 %746
      %748 = vrot.lane.b32.xlu0 %v743, 113
      %v749 = vpop.permute.xlu0 %748
      %v750 = vsel %vm414, %v745, %v747
      %v751 = vsel %vm414, %v747, %v749
      %v754 = vsel %vm277, %v750, 0.0
      %v755 = vsel %vm278, %v751, 0.0
      %756 = vst [vmem:[#allocation4 + $0x30] sm:$0xf] %v754
      %757 = vst [vmem:[#allocation4 + $0x38] sm:$0xf] %v755
      %v758 = vld [vmem:[#allocation2 + $0x8] sm:$0xf0]
      %v759 = vld [vmem:[#allocation2 + $0x10] sm:$0xf0]
      %v760 = vld [vmem:[#allocation2 + $0x18] sm:$0xf0]
      %764 = vrot.lane.b32.xlu0 %v758, 112
      %v765 = vpop.permute.xlu0 %764
      %766 = vrot.lane.b32.xlu0 %v759, 112
      %v767 = vpop.permute.xlu0 %766
      %768 = vrot.lane.b32.xlu0 %v760, 112
      %v769 = vpop.permute.xlu0 %768
      %v770 = vsel %vm435, %v765, %v767
      %v771 = vsel %vm435, %v767, %v769
      %774 = vst [vmem:[#allocation4 + $0x30] sm:$0xf0] %v770
      %775 = vst [vmem:[#allocation4 + $0x38] sm:$0xf0] %v771
      %v776 = vld [vmem:[#allocation2 + $0x8] sm:$0xf0]
      %v777 = vld [vmem:[#allocation2 + $0x10] sm:$0xf0]
      %v778 = vld [vmem:[#allocation2 + $0x18] sm:$0xf0]
      %v782 = vrot.slane %v776, 4
      %v783 = vrot.slane %v777, 4
      %v784 = vrot.slane %v778, 4
      %785 = vrot.lane.b32.xlu0 %v782, 111
      %v786 = vpop.permute.xlu0 %785
      %787 = vrot.lane.b32.xlu0 %v783, 111
      %v788 = vpop.permute.xlu0 %787
      %789 = vrot.lane.b32.xlu0 %v784, 111
      %v790 = vpop.permute.xlu0 %789
      %v791 = vsel %vm454, %v786, %v788
      %v792 = vsel %vm454, %v788, %v790
      %v795 = vsel %vm279, %v791, 0.0
      %v796 = vsel %vm280, %v792, 0.0
      %797 = vst [vmem:[#allocation4 + $0x40] sm:$0xf] %v795
      %798 = vst [vmem:[#allocation4 + $0x48] sm:$0xf] %v796
      %v799 = vld [vmem:[%s4] sm:$0xf]
      %v800 = vld [vmem:[#allocation4] sm:$0xff]
      %v801 = vld [vmem:[#allocation4 + $0x8] sm:$0xff]
      %v802 = vld [vmem:[#allocation4 + $0x10] sm:$0xff]
      %v803 = vld [vmem:[#allocation4 + $0x18] sm:$0xff]
      %v804 = vld [vmem:[#allocation4 + $0x20] sm:$0xff]
      %v805 = vld [vmem:[#allocation4 + $0x28] sm:$0xff]
      %v806 = vld [vmem:[#allocation4 + $0x30] sm:$0xff]
      %v807 = vld [vmem:[#allocation4 + $0x38] sm:$0xff]
      %v808 = vld [vmem:[#allocation4 + $0x40] sm:$0xf]
      %v809 = vld [vmem:[#allocation4 + $0x48] sm:$0xf]
      %vm810 = vcmask 293888
      %v812 = vsel %vm810, %v799, 0
      %vm814 = vcmask 1043456
      %v816 = vsel %vm814, %v808, 0
      %v819 = vsel %vm814, %v809, 0
      %821 = vmatprep.subr.mxu0 %v801
      %822 = vmatpush1.msra.mxu0 %v800
      %823 = vmatprep.subr.mxu0 %v803
      %824 = vmatpush1.msra.mxu0 %v802
      %825 = vmatprep.subr.mxu0 %v805
      %826 = vmatpush1.msra.mxu0 %v804
      %827 = vmatprep.subr.mxu0 %v807
      %828 = vmatpush1.msra.mxu0 %v806
      %829 = vmatprep.subr.mxu0 %v819
      %830 = vmatpush1.msra.mxu0 %v816
      %831 = vmatprep.subr.mxu0 0.0
      %832 = vmatpush1.msra.mxu0 0.0
      %833 = vmatprep.subr.mxu0 0.0
      %834 = vmatpush1.msra.mxu0 0.0
      %835 = vmatprep.subr.mxu0 0.0
      %836 = vmatpush1.msra.mxu0 0.0
      %837 = vmatprep.subr.mxu0 0.0
      %838 = vmatpush1.msra.mxu0 0.0
      %839 = vmatprep.subr.mxu0 0.0
      %840 = vmatpush1.msra.mxu0 0.0
      %841 = vmatprep.subr.mxu0 0.0
      %842 = vmatpush1.msra.mxu0 0.0
      %843 = vmatprep.subr.mxu0 0.0
      %844 = vmatpush1.msra.mxu0 0.0
      %845 = vmatprep.subr.mxu0 0.0
      %846 = vmatpush1.msra.mxu0 0.0
      %847 = vmatprep.subr.mxu0 0.0
      %848 = vmatpush1.msra.mxu0 0.0
      %849 = vmatprep.subr.mxu0 0.0
      %850 = vmatpush1.msra.mxu0 0.0
      %851 = vmatprep.subr.mxu0 0.0
      %852 = vmatpush1.msra.mxu0 0.0
      %853 = vmatprep.subr.mxu0 0.0
      %854 = vmatpush1.msra.mxu0 0.0
      %855 = vmatprep.subr.mxu0 0.0
      %856 = vmatpush1.msra.mxu0 0.0
      %857 = vmatprep.subr.mxu0 0.0
      %858 = vmatpush1.msra.mxu0 0.0
      %859 = vmatprep.subr.mxu0 0.0
      %860 = vmatpush1.msra.mxu0 0.0
      %861 = vmatprep.subr.mxu0 0.0
      %862 = vmatpush1.msra.mxu0 0.0
      %863 = vmatprep.subr.mxu0 0.0
      %864 = vmatpush1.msra.mxu0 0.0
      %865 = vmatprep.subr.mxu0 0.0
      %866 = vmatpush1.msra.mxu0 0.0
      %867 = vmatprep.subr.mxu0 0.0
      %868 = vmatpush1.msra.mxu0 0.0
      %869 = vmatprep.subr.mxu0 0.0
      %870 = vmatpush1.msra.mxu0 0.0
      %871 = vmatprep.subr.mxu0 0.0
      %872 = vmatpush1.msra.mxu0 0.0
      %873 = vmatprep.subr.mxu0 0.0
      %874 = vmatpush1.msra.mxu0 0.0
      %875 = vmatprep.subr.mxu0 0.0
      %876 = vmatpush1.msra.mxu0 0.0
      %877 = vmatprep.subr.mxu0 0.0
      %878 = vmatpush1.msra.mxu0 0.0
      %879 = vmatprep.subr.mxu0 0.0
      %880 = vmatpush1.msra.mxu0 0.0
      %881 = vmatprep.subr.mxu0 0.0
      %882 = vmatpush1.msra.mxu0 0.0
      %883 = vmatprep.subr.mxu0 0.0
      %884 = vmatpush1.msra.mxu0 0.0
      %885 = vmatprep.mubr.f32.mxu0 0.0
      %886 = vmatmul.mubr.f32.gmra.mrb[0].mxu0 %v812
      %v887 = vpop.f32.mrb[0].mxu0
      %v888 = vadd.f32 0.0, %v887
      %v889 = vpop.f32.mrb[0].mxu0
      %v890 = vadd.f32 0.0, %v889
      %891 = vdwg.mxu0
      %v892 = vadd.f32 %v575, %v888
      %v893 = vadd.f32 %v577, %v890
      %v894 = vmax.f32 %v892, 0.0
      %v895 = vmax.f32 %v893, 0.0
      %v896 = vmul.f32 %v588, %v291
      %v897 = vmul.f32 %v590, %v284
      %v898 = vsub.f32 1.0, %v588
      %v899 = vsub.f32 1.0, %v590
      %v902 = vrot.slane %v894, 4
      %v903 = vrot.slane %v895, 4
      %v906 = vmul.f32 %v898, %v902
      %v907 = vmul.f32 %v899, %v903
      %v908 = vadd.f32 %v896, %v906
      %v909 = vadd.f32 %v897, %v907
      %v912 = vcombine.high %v908, %v909
      %914 = vst [vmem:[%s248] sm:$0xff] %v912
      %s915 = smul.u32 2, %s16
      %p916 = scmp.lt.s32.totalorder %s915, 3
      %s917 = scalar_select %p916, %s915, 3
      %s918 = smul.addr %s917, 4
      %s919 = scalar_lea.vmem %s5, %s918
      // Predicated region
      $region41: #{conv_gru_cell.1} parent=39 // pred_check
        %p920 = pneg %p149
      $region42: #{conv_gru_cell.1} parent=39 // pred_check_branch
        %922 = sbr.rel (%p920) target = $region44
      $region43: #{conv_gru_cell.1} parent=39 // pred_region
        %s923 = smul.u32 2, %s16
      $region44: #{conv_gru_cell.1} parent=39 // pred_fallthru
        _
    $region40: #{conv_gru_cell.1} parent=5 // pred_fallthru
      _
    %p924 = scmp.le.s32.totalorder 2, %s11
    // Predicated region
    $region45: #{conv_gru_cell.1} parent=5 // pred_check
      %p925 = pneg %p924
    $region46: #{conv_gru_cell.1} parent=5 // pred_check_branch
      %927 = sbr.rel (%p925) target = $region48
    $region47: #{conv_gru_cell.1} parent=5 // pred_region
      %s928 = ssub.s32 %s11, 2
      // Predicated region
      $region49: #{conv_gru_cell.1} parent=47 // pred_check
        %p929 = pneg %p155
      $region50: #{conv_gru_cell.1} parent=47 // pred_check_branch
        %931 = sbr.rel (%p929) target = $region52
      $region51: #{conv_gru_cell.1} parent=47 // pred_region
        %s932 = smul.u32 2, %s17
        %p933 = scmp.lt.s32.totalorder %s932, 3
        %s934 = scalar_select %p933, %s932, 3
        %s935 = smul.addr %s934, 4
        %s936 = scalar_lea.vmem %s5, %s935
      $region52: #{conv_gru_cell.1} parent=47 // pred_fallthru
        _
    $region48: #{conv_gru_cell.1} parent=5 // pred_fallthru
      _
  $region6: #{conv_gru_cell.1} parent=0 // loop_footer
    %s15 = sadd.s32 1, %s11
  $region7: #{conv_gru_cell.1} parent=0 // loop_footer_branch
    %10 = sbr.rel target = $region3
  $region8: #{conv_gru_cell.1} parent=0 // loop_exit
    _

</llo_original>
